<compile_context>
chip_gen: v7x
topology: tpu7x:2x2x1
jax: 0.10.0
libtpu: 0.0.40
codegen_flags: <defaults>
</compile_context>

<pallas_src>
import jax
import jax.numpy as jnp
from jax import lax
from jax.experimental import pallas as pl
from jax.experimental.pallas import tpu as pltpu


def _cmix_kernel(x_ref, maa_k_ref, maa_r_ref, wk_ref, wv_ref, wr_ref,
                 o_ref, carry_ref):
    # x_ref / o_ref: (tq, C) tile of the current batch element (batch dim squeezed)
    # carry_ref:     (1, C) VMEM scratch holding the last row of the previous tile
    t = pl.program_id(1)

    @pl.when(t == 0)
    def _():
        carry_ref[...] = jnp.zeros_like(carry_ref)

    x = x_ref[...]                              # (tq, C) f32
    prev_row = carry_ref[...]                   # (1, C)  f32
    tq = x.shape[0]

    # time_shift == ZeroPad2d((0,0,1,-1)): shifted[i] = x[i-1]; shifted[0] comes
    # from the previous tile's last row (zeros at t == 0).
    rolled = pltpu.roll(x, shift=1, axis=0)                       # rolled[0] = x[-1]
    row0 = lax.broadcasted_iota(jnp.int32, (tq, 1), 0) == 0       # (tq, 1) column mask
    shifted = jnp.where(row0, prev_row, rolled)                   # (tq, C)

    # Save the carry for the next T tile (read of prev_row above happens first).
    carry_ref[...] = x[tq - 1:tq, :]

    maa_k = maa_k_ref[...]                      # (1, C) -> broadcasts over tq
    maa_r = maa_r_ref[...]
    xx = shifted - x
    xk = x + xx * maa_k
    xr = x + xx * maa_r

    # key: (tq, C) @ (C, 3C) -> (tq, 3C); bf16 MXU inputs, f32 accumulation.
    k = jnp.dot(xk.astype(jnp.bfloat16), wk_ref[...],
                preferred_element_type=jnp.float32)
    k = jnp.maximum(k, 0.0)
    k = k * k                                   # relu(.)**2 in f32

    # value: (tq, 3C) @ (3C, C) -> (tq, C)
    v = jnp.dot(k.astype(jnp.bfloat16), wv_ref[...],
                preferred_element_type=jnp.float32)

    # receptance gate: sigmoid((tq, C) @ (C, C))
    r = jax.nn.sigmoid(jnp.dot(xr.astype(jnp.bfloat16), wr_ref[...],
                               preferred_element_type=jnp.float32))

    o_ref[...] = (r * v).astype(o_ref.dtype)
    # TODO(synk): dropout omitted (p=0 / eval mode => identity).


def _pick_tq(T):
    # Prefer MXU-friendly tile heights; fall back to full T for tiny sequences.
    for cand in (512, 256, 128, 64, 32, 16, 8):
        if T % cand == 0:
            return cand
    return T


def rwkv_channelmix_x051a(x, time_maa_k, time_maa_r, wk_t, wv_t, wr_t, *, tq=None):
    """x: (B, T, C) f32; time_maa_*: (1, C); w*_t: pre-transposed (in, out)."""
    B, T, C = x.shape
    C3 = 3 * C
    assert wk_t.shape == (C, C3) and wv_t.shape == (C3, C) and wr_t.shape == (C, C)

    if tq is None:
        tq = _pick_tq(T)
    assert T % tq == 0, f"T={T} must be divisible by tq={tq}"
    n_t = T // tq

    # bf16 weights for the MXU (in production these would be stored bf16).
    wk_b = wk_t.astype(jnp.bfloat16)
    wv_b = wv_t.astype(jnp.bfloat16)
    wr_b = wr_t.astype(jnp.bfloat16)

    # Explicit VMEM budget: single-buffered bf16 weights + double-buffered f32
    # x/out tiles + intermediates/slack.  Clamp into [32 MiB, 64 MiB] so it is
    # valid on every generation (v7x has 64 MiB per TC).
    weight_bytes = (C * C3 + C3 * C + C * C) * 2          # bf16, single-buffered
    tile_bytes = 2 * 2 * tq * C * 4                        # x + out, 2-deep, f32
    interm_bytes = 3 * tq * C3 * 4                         # k + bf16 copies + slack
    vmem_limit = int(min(max(weight_bytes + tile_bytes + interm_bytes + (8 << 20),
                             32 * 1024 * 1024),
                         64 * 1024 * 1024))

    w_mode = pl.Buffered(1)   # constant index_map => no re-DMA, no double buffer

    return pl.pallas_call(
        _cmix_kernel,
        out_shape=jax.ShapeDtypeStruct((B, T, C), x.dtype),
        grid_spec=pltpu.PrefetchScalarGridSpec(
            num_scalar_prefetch=0,
            grid=(B, n_t),
            in_specs=[
                pl.BlockSpec((pl.Squeezed(), tq, C), lambda b, t: (b, t, 0)),   # x
                pl.BlockSpec((1, C), lambda b, t: (0, 0)),                      # time_maa_k
                pl.BlockSpec((1, C), lambda b, t: (0, 0)),                      # time_maa_r
                pl.BlockSpec((C, C3), lambda b, t: (0, 0), pipeline_mode=w_mode),  # key W^T
                pl.BlockSpec((C3, C), lambda b, t: (0, 0), pipeline_mode=w_mode),  # value W^T
                pl.BlockSpec((C, C), lambda b, t: (0, 0), pipeline_mode=w_mode),   # recept. W^T
            ],
            out_specs=pl.BlockSpec((pl.Squeezed(), tq, C), lambda b, t: (b, t, 0)),
            scratch_shapes=[pltpu.VMEM((1, C), jnp.float32)],                   # time-shift carry
        ),
        compiler_params=pltpu.CompilerParams(
            dimension_semantics=("parallel", "arbitrary"),
            vmem_limit_bytes=vmem_limit),
    )(x, time_maa_k, time_maa_r, wk_b, wv_b, wr_b)


def _reference_f32(x, time_maa_k, time_maa_r, wk_t, wv_t, wr_t):
    # Pure-JAX f32 reference mirroring the PyTorch forward.
    shifted = jnp.concatenate([jnp.zeros_like(x[:, :1, :]), x[:, :-1, :]], axis=1)
    xx = shifted - x
    xk = x + xx * time_maa_k[None]
    xr = x + xx * time_maa_r[None]
    k = jnp.maximum(xk @ wk_t, 0.0) ** 2
    v = k @ wv_t
    r = jax.nn.sigmoid(xr @ wr_t)
    return r * v


def _reference_bf16(x, time_maa_k, time_maa_r, wk_t, wv_t, wr_t):
    # Emulates the kernel's numerics: bf16 matmul inputs, f32 accumulation.
    bf = jnp.bfloat16
    shifted = jnp.concatenate([jnp.zeros_like(x[:, :1, :]), x[:, :-1, :]], axis=1)
    xx = shifted - x
    xk = x + xx * time_maa_k[None]
    xr = x + xx * time_maa_r[None]
    k = jnp.einsum('btc,cd->btd', xk.astype(bf), wk_t.astype(bf),
                   preferred_element_type=jnp.float32)
    k = jnp.maximum(k, 0.0) ** 2
    v = jnp.einsum('btd,dc->btc', k.astype(bf), wv_t.astype(bf),
                   preferred_element_type=jnp.float32)
    r = jax.nn.sigmoid(jnp.einsum('btc,cd->btd', xr.astype(bf), wr_t.astype(bf),
                                  preferred_element_type=jnp.float32))
    return r * v


if __name__ == "__main__":
    # Small config: n_embd=32, n_layer=4, layer_id=1, bias=False, dropout=0.0.
    # T=16 with tq=8 exercises the cross-tile time-shift carry (2 T tiles).
    B, T, C = 2, 16, 32
    n_layer, layer_id = 4, 1
    C3 = 3 * C

    ratio_1_to_almost0 = 1.0 - layer_id / n_layer
    ddd = jnp.arange(C, dtype=jnp.float32) / C                 # (C,)
    time_maa_k = (1.0 - jnp.power(ddd, ratio_1_to_almost0)).reshape(1, C)
    time_maa_r = (1.0 - jnp.power(ddd, ratio_1_to_almost0)).reshape(1, C)

    key = jax.random.PRNGKey(0)
    kx, kk, kv, kr = jax.random.split(key, 4)
    x = jax.random.normal(kx, (B, T, C), dtype=jnp.float32)
    # Linear weights stored pre-transposed: (in, out).
    wk_t = 0.02 * jax.random.normal(kk, (C, C3), dtype=jnp.float32)
    wv_t = 0.02 * jax.random.normal(kv, (C3, C), dtype=jnp.float32)
    wr_t = 0.02 * jax.random.normal(kr, (C, C), dtype=jnp.float32)

    out = rwkv_channelmix_x051a(x, time_maa_k, time_maa_r, wk_t, wv_t, wr_t, tq=8)
    out = jax.block_until_ready(out)
    assert out.shape == (B, T, C)

    # Tight check vs. a bf16-matmul reference (same numerics as the kernel).
    ref_bf16 = _reference_bf16(x, time_maa_k, time_maa_r, wk_t, wv_t, wr_t)
    assert jnp.allclose(out, ref_bf16, atol=1e-4, rtol=1e-2), \
        "mismatch vs bf16-emulated reference"

    # Loose check vs. the f32 module semantics (bf16 MXU inputs lose ~3 digits).
    ref_f32 = _reference_f32(x, time_maa_k, time_maa_r, wk_t, wv_t, wr_t)
    assert jnp.allclose(out, ref_f32, atol=1e-3, rtol=3e-2), \
        "mismatch vs f32 reference"

    print("KERNEL_OK")
</pallas_src>

<mosaic_0001>
module attributes {stable_mosaic.version = 11 : i64} {
  func.func @_cmix_kernel(%arg0: i32, %arg1: i32, %arg2: memref<1x8x32xf32, #tpu.memory_space<vmem>>, %arg3: memref<1x32xf32, #tpu.memory_space<vmem>>, %arg4: memref<1x32xf32, #tpu.memory_space<vmem>>, %arg5: memref<32x96xbf16, #tpu.memory_space<vmem>>, %arg6: memref<96x32xbf16, #tpu.memory_space<vmem>>, %arg7: memref<32x32xbf16, #tpu.memory_space<vmem>>, %arg8: memref<1x8x32xf32, #tpu.memory_space<vmem>>, %arg9: memref<1x32xf32, #tpu.memory_space<vmem>>) attributes {dimension_semantics = [#tpu.dimension_semantics<parallel>, #tpu.dimension_semantics<arbitrary>], iteration_bounds = array<i64: 2, 2>, scalar_prefetch = 0 : i64, scratch_operands = 1 : i64, tpu.core_type = #tpu.core_type<tc>, window_params = [{transform_indices = @transform_0, window_bounds = array<i64: 1, 8, 32>}, {pipeline_mode = #tpu.pipeline_mode<synchronous>, transform_indices = @transform_1, window_bounds = array<i64: 1, 32>}, {pipeline_mode = #tpu.pipeline_mode<synchronous>, transform_indices = @transform_2, window_bounds = array<i64: 1, 32>}, {pipeline_mode = #tpu.pipeline_mode<synchronous>, transform_indices = @transform_3, window_bounds = array<i64: 32, 96>}, {pipeline_mode = #tpu.pipeline_mode<synchronous>, transform_indices = @transform_4, window_bounds = array<i64: 96, 32>}, {pipeline_mode = #tpu.pipeline_mode<synchronous>, transform_indices = @transform_5, window_bounds = array<i64: 32, 32>}, {transform_indices = @transform_6, window_bounds = array<i64: 1, 8, 32>}]} {
    %c0_i32 = arith.constant 0 : i32
    %0 = arith.cmpi eq, %arg1, %c0_i32 : i32
    %1 = arith.extui %0 : i1 to i32
    %c0_i32_0 = arith.constant 0 : i32
    %2 = arith.cmpi ne, %1, %c0_i32_0 : i32
    scf.if %2 {
      %cst_25 = arith.constant 0.000000e+00 : f32
      %47 = vector.broadcast %cst_25 : f32 to vector<1x32xf32>
      %c0_26 = arith.constant 0 : index
      %c0_27 = arith.constant 0 : index
      %48 = vector.load %arg9[%c0_26, %c0_27] : memref<1x32xf32, #tpu.memory_space<vmem>>, vector<1x32xf32>
      tpu.vector_store %arg9[%c0_26, %c0_27], %47 {strides = array<i32>} : memref<1x32xf32, #tpu.memory_space<vmem>>, vector<1x32xf32>,
    } else {
    }
    %c0 = arith.constant 0 : index
    %c0_1 = arith.constant 0 : index
    %c0_2 = arith.constant 0 : index
    %3 = vector.load %arg2[%c0, %c0_1, %c0_2] : memref<1x8x32xf32, #tpu.memory_space<vmem>>, vector<1x8x32xf32>
    %4 = vector.shape_cast %3 : vector<1x8x32xf32> to vector<8x32xf32>
    %c0_3 = arith.constant 0 : index
    %c0_4 = arith.constant 0 : index
    %5 = vector.load %arg9[%c0_3, %c0_4] : memref<1x32xf32, #tpu.memory_space<vmem>>, vector<1x32xf32>
    %c1_i32 = arith.constant 1 : i32
    %6 = tpu.dynamic_rotate %4 by %c1_i32 dim 0 : vector<8x32xf32>, i32 -> vector<8x32xf32>
    %7 = tpu.iota {dimensions = array<i32: 0>} : vector<8x1xi32>
    %c0_i32_5 = arith.constant 0 : i32
    %8 = vector.broadcast %c0_i32_5 : i32 to vector<8x1xi32>
    %9 = arith.cmpi eq, %7, %8 : vector<8x1xi32>
    %10 = vector.shape_cast %9 : vector<8x1xi1> to vector<8x1xi1>
    %11 = vector.broadcast %10 : vector<8x1xi1> to vector<8x32xi1>
    %12 = vector.shape_cast %5 : vector<1x32xf32> to vector<1x32xf32>
    %13 = vector.broadcast %12 : vector<1x32xf32> to vector<8x32xf32>
    %14 = arith.select %11, %13, %6 : vector<8x32xi1>, vector<8x32xf32>
    %15 = vector.extract_strided_slice %4 {offsets = [7, 0], sizes = [1, 32], strides = [1, 1]} : vector<8x32xf32> to vector<1x32xf32>
    %c0_6 = arith.constant 0 : index
    %c0_7 = arith.constant 0 : index
    %16 = vector.load %arg9[%c0_6, %c0_7] : memref<1x32xf32, #tpu.memory_space<vmem>>, vector<1x32xf32>
    tpu.vector_store %arg9[%c0_6, %c0_7], %15 {strides = array<i32>} : memref<1x32xf32, #tpu.memory_space<vmem>>, vector<1x32xf32>,
    %c0_8 = arith.constant 0 : index
    %c0_9 = arith.constant 0 : index
    %17 = vector.load %arg3[%c0_8, %c0_9] : memref<1x32xf32, #tpu.memory_space<vmem>>, vector<1x32xf32>
    %c0_10 = arith.constant 0 : index
    %c0_11 = arith.constant 0 : index
    %18 = vector.load %arg4[%c0_10, %c0_11] : memref<1x32xf32, #tpu.memory_space<vmem>>, vector<1x32xf32>
    %19 = arith.subf %14, %4 : vector<8x32xf32>
    %20 = vector.broadcast %17 : vector<1x32xf32> to vector<8x32xf32>
    %21 = arith.mulf %19, %20 : vector<8x32xf32>
    %22 = arith.addf %4, %21 : vector<8x32xf32>
    %23 = vector.broadcast %18 : vector<1x32xf32> to vector<8x32xf32>
    %24 = arith.mulf %19, %23 : vector<8x32xf32>
    %25 = arith.addf %4, %24 : vector<8x32xf32>
    %26 = arith.truncf %22 : vector<8x32xf32> to vector<8x32xbf16>
    %c0_12 = arith.constant 0 : index
    %c0_13 = arith.constant 0 : index
    %27 = vector.load %arg5[%c0_12, %c0_13] : memref<32x96xbf16, #tpu.memory_space<vmem>>, vector<32x96xbf16>
    %cst = arith.constant dense<0.000000e+00> : vector<8x96xf32>
    %28 = tpu.matmul %26, %27, %cst {dimension_numbers = #tpu.dot_dimension_numbers<[1], [0], [0], [1], [0, 0, 1, 1], [], []>} : vector<8x32xbf16>, vector<32x96xbf16>, vector<8x96xf32> -> vector<8x96xf32>
    %cst_14 = arith.constant 0.000000e+00 : f32
    %29 = vector.broadcast %cst_14 : f32 to vector<8x96xf32>
    %30 = arith.maximumf %28, %29 : vector<8x96xf32>
    %31 = arith.mulf %30, %30 : vector<8x96xf32>
    %32 = arith.truncf %31 : vector<8x96xf32> to vector<8x96xbf16>
    %c0_15 = arith.constant 0 : index
    %c0_16 = arith.constant 0 : index
    %33 = vector.load %arg6[%c0_15, %c0_16] : memref<96x32xbf16, #tpu.memory_space<vmem>>, vector<96x32xbf16>
    %cst_17 = arith.constant dense<0.000000e+00> : vector<8x32xf32>
    %34 = tpu.matmul %32, %33, %cst_17 {dimension_numbers = #tpu.dot_dimension_numbers<[1], [0], [0], [1], [0, 0, 1, 1], [], []>} : vector<8x96xbf16>, vector<96x32xbf16>, vector<8x32xf32> -> vector<8x32xf32>
    %35 = arith.truncf %25 : vector<8x32xf32> to vector<8x32xbf16>
    %c0_18 = arith.constant 0 : index
    %c0_19 = arith.constant 0 : index
    %36 = vector.load %arg7[%c0_18, %c0_19] : memref<32x32xbf16, #tpu.memory_space<vmem>>, vector<32x32xbf16>
    %cst_20 = arith.constant dense<0.000000e+00> : vector<8x32xf32>
    %37 = tpu.matmul %35, %36, %cst_20 {dimension_numbers = #tpu.dot_dimension_numbers<[1], [0], [0], [1], [0, 0, 1, 1], [], []>} : vector<8x32xbf16>, vector<32x32xbf16>, vector<8x32xf32> -> vector<8x32xf32>
    %38 = arith.negf %37 : vector<8x32xf32>
    %39 = math.exp %38 : vector<8x32xf32>
    %cst_21 = arith.constant 1.000000e+00 : f32
    %40 = vector.broadcast %cst_21 : f32 to vector<8x32xf32>
    %41 = arith.addf %40, %39 : vector<8x32xf32>
    %42 = arith.divf %40, %41 : vector<8x32xf32>
    %43 = arith.mulf %42, %34 : vector<8x32xf32>
    %c0_22 = arith.constant 0 : index
    %c0_23 = arith.constant 0 : index
    %c0_24 = arith.constant 0 : index
    %44 = vector.load %arg8[%c0_22, %c0_23, %c0_24] : memref<1x8x32xf32, #tpu.memory_space<vmem>>, vector<1x8x32xf32>
    %45 = vector.shape_cast %44 : vector<1x8x32xf32> to vector<8x32xf32>
    %46 = vector.shape_cast %43 : vector<8x32xf32> to vector<1x8x32xf32>
    tpu.vector_store %arg8[%c0_22, %c0_23, %c0_24], %46 {strides = array<i32>} : memref<1x8x32xf32, #tpu.memory_space<vmem>>, vector<1x8x32xf32>,
    return
  }
  func.func @transform_0(%arg0: i32, %arg1: i32) -> (i32, i32, i32) {
    %c0_i32 = arith.constant 0 : i32
    %c0_i32_0 = arith.constant 0 : i32
    return %arg0, %arg1, %c0_i32 : i32, i32, i32
  }
  func.func @transform_1(%arg0: i32, %arg1: i32) -> (i32, i32) {
    %c0_i32 = arith.constant 0 : i32
    %c0_i32_0 = arith.constant 0 : i32
    %c0_i32_1 = arith.constant 0 : i32
    return %c0_i32, %c0_i32_0 : i32, i32
  }
  func.func @transform_2(%arg0: i32, %arg1: i32) -> (i32, i32) {
    %c0_i32 = arith.constant 0 : i32
    %c0_i32_0 = arith.constant 0 : i32
    %c0_i32_1 = arith.constant 0 : i32
    return %c0_i32, %c0_i32_0 : i32, i32
  }
  func.func @transform_3(%arg0: i32, %arg1: i32) -> (i32, i32) {
    %c0_i32 = arith.constant 0 : i32
    %c0_i32_0 = arith.constant 0 : i32
    %c0_i32_1 = arith.constant 0 : i32
    return %c0_i32, %c0_i32_0 : i32, i32
  }
  func.func @transform_4(%arg0: i32, %arg1: i32) -> (i32, i32) {
    %c0_i32 = arith.constant 0 : i32
    %c0_i32_0 = arith.constant 0 : i32
    %c0_i32_1 = arith.constant 0 : i32
    return %c0_i32, %c0_i32_0 : i32, i32
  }
  func.func @transform_5(%arg0: i32, %arg1: i32) -> (i32, i32) {
    %c0_i32 = arith.constant 0 : i32
    %c0_i32_0 = arith.constant 0 : i32
    %c0_i32_1 = arith.constant 0 : i32
    return %c0_i32, %c0_i32_0 : i32, i32
  }
  func.func @transform_6(%arg0: i32, %arg1: i32) -> (i32, i32, i32) {
    %c0_i32 = arith.constant 0 : i32
    %c0_i32_0 = arith.constant 0 : i32
    return %arg0, %arg1, %c0_i32 : i32, i32, i32
  }
}

</mosaic_0001>

<llo_original>
// kernel: tpu_custom_call.1
$region0: #{tpu_custom_call.1}
  #allocation0 [shape = 'u32[]', space=smem, size = 0x4, offset = 0x4, fixed_abs, tag = 'smem constant byte address 0x4 - core index']
  #allocation1 [shape = 'u32[144,128]{1,0:T(1,128)}', space=vmem, size = 0x12000, scoped, tag = 'internal scratch']
  #allocation2 [shape = 'f32[1,32]{1,0:T(1,128)}', space=vmem, size = 0x200, scoped, tag = 'scratch operand']
  %s0 = inlined_call_operand.vmem [shape: f32[2,16,32], index: 0, kind: input, shape index: {}]
  %s1 = inlined_call_operand.vmem [shape: f32[1,32], index: 1, kind: input, shape index: {}]
  %s2 = inlined_call_operand.vmem [shape: f32[1,32], index: 2, kind: input, shape index: {}]
  %s3 = inlined_call_operand.vmem [shape: bf16[32,96], index: 3, kind: input, shape index: {}]
  %s4 = inlined_call_operand.vmem [shape: bf16[96,32], index: 4, kind: input, shape index: {}]
  %s5 = inlined_call_operand.vmem [shape: bf16[32,32], index: 5, kind: input, shape index: {}]
  %s6 = inlined_call_operand.hbm [shape: f32[2,16,32], index: 6, kind: output, shape index: {}]
  %s7 = sld [smem:[#allocation0]]
  $region61: #{tpu_custom_call.1} parent=0
    _
  %s9 = ssub.s32 1, %s7
  %s10 = scalar_select 0, %s9, %s7
  $region1: #{tpu_custom_call.1} parent=0
    #allocation3 [shape = 'u8[8192]{0}', space=vmem, size = 0x2000, scoped, tag = 'output window, operand 0']
    #allocation4 [shape = 's32[2]{0}', space=sflag, size = 0x8, scoped, tag = 'scoped memory for tpu_custom_call.1']
    %11 = vsyncpa [#allocation4], 0
    %s12 = scalar_lea.sflag [#allocation4], 1
    %13 = vsyncpa %s12, 0
    loop: start=0, step=1, limit=6
    $region2: #{tpu_custom_call.1} parent=1 // loop_pre_header
      _
    $region3: #{tpu_custom_call.1} parent=1 // loop_header
      %s15 = sphi 0, %s19
      %p16 = scmp.ge.s32.totalorder %s15, 6
      %s22 = sphi 0, %s34
      %s23 = sphi 0, %s30
      %s24 = sphi 0, %s22
      %s25 = sphi 0, %s23
      %s26 = sphi 0, %s24
      %s27 = sphi 0, %s25
      %s39 = sphi 0, %s41
      %s42 = sphi 0, %s39
      %s43 = sphi 0, %s42
      %s59 = sphi 0, %s43
      %s63 = sphi 0, %s63
      %s65 = sphi 0, %s63
      %s66 = sphi 0, %s65
      %s80 = sphi 0, %s66
      %s84 = sphi 0, %s84
      %s86 = sphi 0, %s84
      %s87 = sphi 0, %s86
      %s101 = sphi 0, %s87
      %s105 = sphi 0, %s105
      %s107 = sphi 0, %s105
      %s108 = sphi 0, %s107
      %s122 = sphi 0, %s108
      %s126 = sphi 0, %s126
      %s128 = sphi 0, %s126
      %s129 = sphi 0, %s128
      %s143 = sphi 0, %s129
      %s147 = sphi 0, %s147
      %s149 = sphi 0, %s147
      %s150 = sphi 0, %s149
      %s164 = sphi 0, %s150
      %s172 = sphi 0, %s174
      %s175 = sphi 0, %s172
      %s176 = sphi 0, %s175
      %s192 = sphi 0, %s176
    $region4: #{tpu_custom_call.1} parent=1 // loop_header_branch
      %18 = sbr.rel (%p16) target = $region8
    $region5: #{tpu_custom_call.1} parent=1 // loop_body
      %s20 = ssub.s32 %s15, 1
      %s21 = ssub.s32 %s15, 2
      %s28 = sadd.s32 1, %s23
      %p29 = scmp.ge.s32.totalorder %s28, 2
      %s30 = scalar_select %p29, 0, %s28
      %s31 = sadd.s32 1, %s22
      %s32 = scalar_select %p29, %s31, %s22
      %p33 = scmp.ge.s32.totalorder %s32, 2
      %s34 = scalar_select %p33, 0, %s32
      %s35 = ssub.s32 %s22, %s34
      %s36 = ssub.s32 %s23, %s30
      %s37 = sor.u32 %s35, %s36
      %p38 = scmp.eq.s32.totalorder %s37, 0
      %s40 = sadd.s32 %s39, 1
      %s41 = scalar_select %p38, %s39, %s40
      %p44 = pneg %p38
      %p45 = scmp.eq.s32.totalorder %s15, 3
      %p46 = por %p44, %p45
      %p47 = scmp.ne.s32.totalorder %s39, %s42
      %p48 = scmp.eq.s32.totalorder %s15, 0
      %p49 = por %p47, %p48
      %p50 = scmp.ne.s32.totalorder %s39, %s42
      %p51 = scmp.eq.s32.totalorder %s20, 3
      %p52 = por %p50, %p51
      %p53 = scmp.ne.s32.totalorder %s42, %s43
      %p54 = scmp.eq.s32.totalorder %s20, 0
      %p55 = por %p53, %p54
      %p56 = scmp.ne.s32.totalorder %s42, %s43
      %p57 = scmp.eq.s32.totalorder %s21, 3
      %p58 = por %p56, %p57
      %p60 = scmp.ne.s32.totalorder %s43, %s59
      %p61 = scmp.eq.s32.totalorder %s21, 0
      %p62 = por %p60, %p61
      %s64 = sadd.s32 %s63, 1
      %p67 = scmp.eq.s32.totalorder %s15, 3
      %p68 = scmp.ne.s32.totalorder %s63, %s65
      %p69 = scmp.eq.s32.totalorder %s15, 0
      %p70 = por %p68, %p69
      %p71 = scmp.ne.s32.totalorder %s63, %s65
      %p72 = scmp.eq.s32.totalorder %s20, 3
      %p73 = por %p71, %p72
      %p74 = scmp.ne.s32.totalorder %s65, %s66
      %p75 = scmp.eq.s32.totalorder %s20, 0
      %p76 = por %p74, %p75
      %p77 = scmp.ne.s32.totalorder %s65, %s66
      %p78 = scmp.eq.s32.totalorder %s21, 3
      %p79 = por %p77, %p78
      %p81 = scmp.ne.s32.totalorder %s66, %s80
      %p82 = scmp.eq.s32.totalorder %s21, 0
      %p83 = por %p81, %p82
      %s85 = sadd.s32 %s84, 1
      %p88 = scmp.eq.s32.totalorder %s15, 3
      %p89 = scmp.ne.s32.totalorder %s84, %s86
      %p90 = scmp.eq.s32.totalorder %s15, 0
      %p91 = por %p89, %p90
      %p92 = scmp.ne.s32.totalorder %s84, %s86
      %p93 = scmp.eq.s32.totalorder %s20, 3
      %p94 = por %p92, %p93
      %p95 = scmp.ne.s32.totalorder %s86, %s87
      %p96 = scmp.eq.s32.totalorder %s20, 0
      %p97 = por %p95, %p96
      %p98 = scmp.ne.s32.totalorder %s86, %s87
      %p99 = scmp.eq.s32.totalorder %s21, 3
      %p100 = por %p98, %p99
      %p102 = scmp.ne.s32.totalorder %s87, %s101
      %p103 = scmp.eq.s32.totalorder %s21, 0
      %p104 = por %p102, %p103
      %s106 = sadd.s32 %s105, 1
      %p109 = scmp.eq.s32.totalorder %s15, 3
      %p110 = scmp.ne.s32.totalorder %s105, %s107
      %p111 = scmp.eq.s32.totalorder %s15, 0
      %p112 = por %p110, %p111
      %p113 = scmp.ne.s32.totalorder %s105, %s107
      %p114 = scmp.eq.s32.totalorder %s20, 3
      %p115 = por %p113, %p114
      %p116 = scmp.ne.s32.totalorder %s107, %s108
      %p117 = scmp.eq.s32.totalorder %s20, 0
      %p118 = por %p116, %p117
      %p119 = scmp.ne.s32.totalorder %s107, %s108
      %p120 = scmp.eq.s32.totalorder %s21, 3
      %p121 = por %p119, %p120
      %p123 = scmp.ne.s32.totalorder %s108, %s122
      %p124 = scmp.eq.s32.totalorder %s21, 0
      %p125 = por %p123, %p124
      %s127 = sadd.s32 %s126, 1
      %p130 = scmp.eq.s32.totalorder %s15, 3
      %p131 = scmp.ne.s32.totalorder %s126, %s128
      %p132 = scmp.eq.s32.totalorder %s15, 0
      %p133 = por %p131, %p132
      %p134 = scmp.ne.s32.totalorder %s126, %s128
      %p135 = scmp.eq.s32.totalorder %s20, 3
      %p136 = por %p134, %p135
      %p137 = scmp.ne.s32.totalorder %s128, %s129
      %p138 = scmp.eq.s32.totalorder %s20, 0
      %p139 = por %p137, %p138
      %p140 = scmp.ne.s32.totalorder %s128, %s129
      %p141 = scmp.eq.s32.totalorder %s21, 3
      %p142 = por %p140, %p141
      %p144 = scmp.ne.s32.totalorder %s129, %s143
      %p145 = scmp.eq.s32.totalorder %s21, 0
      %p146 = por %p144, %p145
      %s148 = sadd.s32 %s147, 1
      %p151 = scmp.eq.s32.totalorder %s15, 3
      %p152 = scmp.ne.s32.totalorder %s147, %s149
      %p153 = scmp.eq.s32.totalorder %s15, 0
      %p154 = por %p152, %p153
      %p155 = scmp.ne.s32.totalorder %s147, %s149
      %p156 = scmp.eq.s32.totalorder %s20, 3
      %p157 = por %p155, %p156
      %p158 = scmp.ne.s32.totalorder %s149, %s150
      %p159 = scmp.eq.s32.totalorder %s20, 0
      %p160 = por %p158, %p159
      %p161 = scmp.ne.s32.totalorder %s149, %s150
      %p162 = scmp.eq.s32.totalorder %s21, 3
      %p163 = por %p161, %p162
      %p165 = scmp.ne.s32.totalorder %s150, %s164
      %p166 = scmp.eq.s32.totalorder %s21, 0
      %p167 = por %p165, %p166
      %s168 = ssub.s32 %s22, %s34
      %s169 = ssub.s32 %s23, %s30
      %s170 = sor.u32 %s168, %s169
      %p171 = scmp.eq.s32.totalorder %s170, 0
      %s173 = sadd.s32 %s172, 1
      %s174 = scalar_select %p171, %s172, %s173
      %p177 = pneg %p171
      %p178 = scmp.eq.s32.totalorder %s15, 3
      %p179 = por %p177, %p178
      %p180 = scmp.ne.s32.totalorder %s172, %s175
      %p181 = scmp.eq.s32.totalorder %s15, 0
      %p182 = por %p180, %p181
      %p183 = scmp.ne.s32.totalorder %s172, %s175
      %p184 = scmp.eq.s32.totalorder %s20, 3
      %p185 = por %p183, %p184
      %p186 = scmp.ne.s32.totalorder %s175, %s176
      %p187 = scmp.eq.s32.totalorder %s20, 0
      %p188 = por %p186, %p187
      %p189 = scmp.ne.s32.totalorder %s175, %s176
      %p190 = scmp.eq.s32.totalorder %s21, 3
      %p191 = por %p189, %p190
      %p193 = scmp.ne.s32.totalorder %s176, %s192
      %p194 = scmp.eq.s32.totalorder %s21, 0
      %p195 = por %p193, %p194
      %p196 = scmp.le.s32.totalorder 1, %s15
      %p197 = scmp.lt.s32.totalorder %s15, 5
      %p198 = pnand %p196, %p197
      %p199 = pneg %p198
      // Predicated region
      $region9: #{tpu_custom_call.1} parent=5 // pred_check
        _
      $region10: #{tpu_custom_call.1} parent=5 // pred_check_branch
        %201 = sbr.rel (%p198) target = $region12
      $region11: #{tpu_custom_call.1} parent=5 // pred_region
        %s202 = ssub.s32 %s15, 1
        // Predicated region
        $region13: #{tpu_custom_call.1} parent=11 // pred_check
          %p203 = pneg %p76
        $region14: #{tpu_custom_call.1} parent=11 // pred_check_branch
          %205 = sbr.rel (%p203) target = $region16
        $region15: #{tpu_custom_call.1} parent=11 // pred_region
          _
        $region16: #{tpu_custom_call.1} parent=11 // pred_fallthru
          _
        // Predicated region
        $region17: #{tpu_custom_call.1} parent=11 // pred_check
          %p206 = pneg %p97
        $region18: #{tpu_custom_call.1} parent=11 // pred_check_branch
          %208 = sbr.rel (%p206) target = $region20
        $region19: #{tpu_custom_call.1} parent=11 // pred_region
          _
        $region20: #{tpu_custom_call.1} parent=11 // pred_fallthru
          _
        // Predicated region
        $region21: #{tpu_custom_call.1} parent=11 // pred_check
          %p209 = pneg %p118
        $region22: #{tpu_custom_call.1} parent=11 // pred_check_branch
          %211 = sbr.rel (%p209) target = $region24
        $region23: #{tpu_custom_call.1} parent=11 // pred_region
          _
        $region24: #{tpu_custom_call.1} parent=11 // pred_fallthru
          _
        // Predicated region
        $region25: #{tpu_custom_call.1} parent=11 // pred_check
          %p212 = pneg %p139
        $region26: #{tpu_custom_call.1} parent=11 // pred_check_branch
          %214 = sbr.rel (%p212) target = $region28
        $region27: #{tpu_custom_call.1} parent=11 // pred_region
          _
        $region28: #{tpu_custom_call.1} parent=11 // pred_fallthru
          _
        // Predicated region
        $region29: #{tpu_custom_call.1} parent=11 // pred_check
          %p215 = pneg %p160
        $region30: #{tpu_custom_call.1} parent=11 // pred_check_branch
          %217 = sbr.rel (%p215) target = $region32
        $region31: #{tpu_custom_call.1} parent=11 // pred_region
          _
        $region32: #{tpu_custom_call.1} parent=11 // pred_fallthru
          _
      $region12: #{tpu_custom_call.1} parent=5 // pred_fallthru
        _
      %p218 = scmp.lt.s32.totalorder %s15, 4
      // Predicated region
      $region33: #{tpu_custom_call.1} parent=5 // pred_check
        %p219 = pneg %p218
      $region34: #{tpu_custom_call.1} parent=5 // pred_check_branch
        %221 = sbr.rel (%p219) target = $region36
      $region35: #{tpu_custom_call.1} parent=5 // pred_region
        // Predicated region
        $region37: #{tpu_custom_call.1} parent=35 // pred_check
          %p222 = pneg %p49
        $region38: #{tpu_custom_call.1} parent=35 // pred_check_branch
          %224 = sbr.rel (%p222) target = $region40
        $region39: #{tpu_custom_call.1} parent=35 // pred_region
          %p225 = scmp.lt.s32.totalorder %s22, 1
          %s226 = scalar_select %p225, %s22, 1
          %p227 = scmp.lt.s32.totalorder %s23, 1
          %s228 = scalar_select %p227, %s23, 1
          %s229 = smul.addr %s226, 2
          %s230 = sadd.s32 %s228, %s229
          %s231 = smul.addr %s230, 8
          %s232 = scalar_lea.vmem %s0, %s231
        $region40: #{tpu_custom_call.1} parent=35 // pred_fallthru
          _
      $region36: #{tpu_custom_call.1} parent=5 // pred_fallthru
        _
      %p233 = scmp.le.s32.totalorder 1, %s15
      %p234 = scmp.lt.s32.totalorder %s15, 5
      %p235 = pnand %p233, %p234
      %p236 = pneg %p235
      // Predicated region
      $region41: #{tpu_custom_call.1} parent=5 // pred_check
        _
      $region42: #{tpu_custom_call.1} parent=5 // pred_check_branch
        %238 = sbr.rel (%p235) target = $region44
      $region43: #{tpu_custom_call.1} parent=5 // pred_region
        %s239 = ssub.s32 %s15, 1
        %p240 = scmp.lt.s32.totalorder %s24, 1
        %s241 = scalar_select %p240, %s24, 1
        %p242 = scmp.lt.s32.totalorder %s25, 1
        %s243 = scalar_select %p242, %s25, 1
        %s244 = smul.addr %s241, 2
        %s245 = sadd.s32 %s243, %s244
        %s246 = smul.addr %s245, 8
        %s247 = scalar_lea.vmem %s0, %s246
        %p248 = pneg %p55
        %p249 = pneg %p52
        %p250 = pneg %p76
        %p251 = pneg %p73
        %p252 = pneg %p97
        %p253 = pneg %p94
        %p254 = pneg %p118
        %p255 = pneg %p115
        %p256 = pneg %p139
        %p257 = pneg %p136
        %p258 = pneg %p160
        %p259 = pneg %p157
        %p260 = pneg %p188
        %p261 = pneg %p185
        %s262 = sand.u32 %s175, 1
        %s263 = scalar_lea.sflag [#allocation4], %s262
        %s264 = sand.u32 %s175, 1
        %s265 = smul.addr %s264, 8
        %s266 = scalar_lea.vmem [#allocation3], %s265
        %p267 = scmp.lt.s32.totalorder %s24, 1
        %s268 = scalar_select %p267, %s24, 1
        %p269 = scmp.lt.s32.totalorder %s25, 1
        %s270 = scalar_select %p269, %s25, 1
        %s271 = smul.addr %s268, 2
        %s272 = sadd.s32 %s270, %s271
        %s273 = smul.addr %s272, 8
        %s274 = scalar_lea.vmem %s0, %s273
        %p276 = scmp.eq.s32.totalorder %s25, 0
        // Predicated region
        $region45: #{tpu_custom_call.1} parent=43 // pred_check
          %p277 = pneg %p276
        $region46: #{tpu_custom_call.1} parent=43 // pred_check_branch
          %279 = sbr.rel (%p277) target = $region48
        $region47: #{tpu_custom_call.1} parent=43 // pred_region
          %vm280 = vcmask 253952
          %281 = vst.msk [vmem:[#allocation2] sm:$0x1] %vm280, 0.0
        $region48: #{tpu_custom_call.1} parent=43 // pred_fallthru
          _
        %v282 = vld [vmem:[%s274] sm:$0xff]
        %v283 = vld [vmem:[#allocation2] sm:$0x1]
        %v284 = vrot.slane %v282, 7
        %v285 = vlaneseq
        %v286 = vshrl.u32 %v285, 7
        %vm287 = vcmp.eq.s32.totalorder %v286, 0
        %v288 = vsel %vm287, 1, 0
        %vm289 = vcmp.eq.s32.totalorder %v288, 1
        %v291 = vlaneseq
        %v292 = vshrl.u32 %v291, 7
        %v293 = vsub.s32 0, %v292
        %v294 = vrot.slane %v283, %v293
        %v296 = vsel %vm289, %v294, %v284
        %vm297 = vcmask 261127
        %298 = vst.msk [vmem:[#allocation2 - $0x7] sm:$0x80] %vm297, %v282
        %v299 = vld [vmem:[%s1] sm:$0x1]
        %v300 = vld [vmem:[%s2] sm:$0x1]
        %v301 = vsub.f32 %v296, %v282
        %v303 = vlaneseq
        %v304 = vshrl.u32 %v303, 7
        %v305 = vsub.s32 0, %v304
        %v306 = vrot.slane %v299, %v305
        %v308 = vmul.f32 %v301, %v306
        %v309 = vadd.f32 %v282, %v308
        %v311 = vlaneseq
        %v312 = vshrl.u32 %v311, 7
        %v313 = vsub.s32 0, %v312
        %v314 = vrot.slane %v300, %v313
        %v316 = vmul.f32 %v301, %v314
        %v317 = vadd.f32 %v282, %v316
        %v318 = vpack.c.bf16 %v309, %v309
        %v319 = vld [vmem:[%s3] sm:$0xf]
        %v320 = vld [vmem:[%s3 + $0x4] sm:$0xf]
        %v321 = vld [vmem:[%s3 + $0x8] sm:$0xf]
        %v322 = vld [vmem:[%s3 + $0xc] sm:$0xf]
        %v327 = vunpack.c.l.b16 %v319
        %v328 = vunpack.c.l.b16 %v320
        %v329 = vunpack.c.l.b16 %v321
        %v330 = vunpack.c.l.b16 %v322
        %v331 = vpack.c.b16 %v328, %v327
        %v332 = vpack.c.b16 %v330, %v329
        %vm335 = vcmask 261120
        %v337 = vsel %vm335, %v318, 0
        %339 = vmatprep.subr.bf16.mxu0 0
        %340 = vmatpush1.bf16.msra.mxu0 %v331
        %341 = vmatprep.subr.bf16.mxu0 0
        %342 = vmatpush1.bf16.msra.mxu0 %v332
        %343 = vmatprep.subr.bf16.mxu0 0
        %344 = vmatpush1.bf16.msra.mxu0 0
        %345 = vmatprep.subr.bf16.mxu0 0
        %346 = vmatpush1.bf16.msra.mxu0 0
        %347 = vmatprep.subr.bf16.mxu0 0
        %348 = vmatpush1.bf16.msra.mxu0 0
        %349 = vmatprep.subr.bf16.mxu0 0
        %350 = vmatpush1.bf16.msra.mxu0 0
        %351 = vmatprep.subr.bf16.mxu0 0
        %352 = vmatpush1.bf16.msra.mxu0 0
        %353 = vmatprep.subr.bf16.mxu0 0
        %354 = vmatpush1.bf16.msra.mxu0 0
        %355 = vmatprep.subr.bf16.mxu0 0
        %356 = vmatpush1.bf16.msra.mxu0 0
        %357 = vmatprep.subr.bf16.mxu0 0
        %358 = vmatpush1.bf16.msra.mxu0 0
        %359 = vmatprep.subr.bf16.mxu0 0
        %360 = vmatpush1.bf16.msra.mxu0 0
        %361 = vmatprep.subr.bf16.mxu0 0
        %362 = vmatpush1.bf16.msra.mxu0 0
        %363 = vmatprep.subr.bf16.mxu0 0
        %364 = vmatpush1.bf16.msra.mxu0 0
        %365 = vmatprep.subr.bf16.mxu0 0
        %366 = vmatpush1.bf16.msra.mxu0 0
        %367 = vmatprep.subr.bf16.mxu0 0
        %368 = vmatpush1.bf16.msra.mxu0 0
        %369 = vmatprep.subr.bf16.mxu0 0
        %370 = vmatpush1.bf16.msra.mxu0 0
        %371 = vmatprep.mubr.bf16.mxu0 0
        %372 = vmatmul.mubr.bf16.gmra.mrb[0].mxu0 %v337
        %v373 = vpop.f32.mrb[0].mxu0
        %v374 = vadd.f32 0.0, %v373
        %v375 = vpop.f32.mrb[0].mxu0
        %v376 = vpop.f32.mrb[0].mxu0
        %v377 = vpop.f32.mrb[0].mxu0
        %378 = vdwg.mxu0
        %v379 = vmax.f32 %v374, 0.0
        %v380 = vmul.f32 %v379, %v379
        %v381 = vpack.c.bf16 %v380, %v380
        %v382 = vld [vmem:[%s4] sm:$0xf]
        %v383 = vld [vmem:[%s4 + $0x4] sm:$0xf]
        %v384 = vld [vmem:[%s4 + $0x8] sm:$0xf]
        %v385 = vld [vmem:[%s4 + $0xc] sm:$0xf]
        %v386 = vld [vmem:[%s4 + $0x10] sm:$0xf]
        %v387 = vld [vmem:[%s4 + $0x14] sm:$0xf]
        %v388 = vld [vmem:[%s4 + $0x18] sm:$0xf]
        %v389 = vld [vmem:[%s4 + $0x1c] sm:$0xf]
        %v390 = vld [vmem:[%s4 + $0x20] sm:$0xf]
        %v391 = vld [vmem:[%s4 + $0x24] sm:$0xf]
        %v392 = vld [vmem:[%s4 + $0x28] sm:$0xf]
        %v393 = vld [vmem:[%s4 + $0x2c] sm:$0xf]
        %v406 = vunpack.c.l.b16 %v382
        %v407 = vunpack.c.l.b16 %v383
        %v408 = vunpack.c.l.b16 %v384
        %v409 = vunpack.c.l.b16 %v385
        %v410 = vunpack.c.l.b16 %v386
        %v411 = vunpack.c.l.b16 %v387
        %v412 = vunpack.c.l.b16 %v388
        %v413 = vunpack.c.l.b16 %v389
        %v414 = vunpack.c.l.b16 %v390
        %v415 = vunpack.c.l.b16 %v391
        %v416 = vunpack.c.l.b16 %v392
        %v417 = vunpack.c.l.b16 %v393
        %v418 = vpack.c.b16 %v407, %v406
        %v419 = vpack.c.b16 %v409, %v408
        %v420 = vpack.c.b16 %v411, %v410
        %v421 = vpack.c.b16 %v413, %v412
        %v422 = vpack.c.b16 %v415, %v414
        %v423 = vpack.c.b16 %v417, %v416
        %vm430 = vcmask 785408
        %v432 = vsel %vm430, %v381, 0
        %434 = vmatprep.subr.bf16.mxu0 0
        %435 = vmatpush1.bf16.msra.mxu0 %v418
        %436 = vmatprep.subr.bf16.mxu0 0
        %437 = vmatpush1.bf16.msra.mxu0 %v419
        %438 = vmatprep.subr.bf16.mxu0 0
        %439 = vmatpush1.bf16.msra.mxu0 %v420
        %440 = vmatprep.subr.bf16.mxu0 0
        %441 = vmatpush1.bf16.msra.mxu0 %v421
        %442 = vmatprep.subr.bf16.mxu0 0
        %443 = vmatpush1.bf16.msra.mxu0 %v422
        %444 = vmatprep.subr.bf16.mxu0 0
        %445 = vmatpush1.bf16.msra.mxu0 %v423
        %446 = vmatprep.subr.bf16.mxu0 0
        %447 = vmatpush1.bf16.msra.mxu0 0
        %448 = vmatprep.subr.bf16.mxu0 0
        %449 = vmatpush1.bf16.msra.mxu0 0
        %450 = vmatprep.subr.bf16.mxu0 0
        %451 = vmatpush1.bf16.msra.mxu0 0
        %452 = vmatprep.subr.bf16.mxu0 0
        %453 = vmatpush1.bf16.msra.mxu0 0
        %454 = vmatprep.subr.bf16.mxu0 0
        %455 = vmatpush1.bf16.msra.mxu0 0
        %456 = vmatprep.subr.bf16.mxu0 0
        %457 = vmatpush1.bf16.msra.mxu0 0
        %458 = vmatprep.subr.bf16.mxu0 0
        %459 = vmatpush1.bf16.msra.mxu0 0
        %460 = vmatprep.subr.bf16.mxu0 0
        %461 = vmatpush1.bf16.msra.mxu0 0
        %462 = vmatprep.subr.bf16.mxu0 0
        %463 = vmatpush1.bf16.msra.mxu0 0
        %464 = vmatprep.subr.bf16.mxu0 0
        %465 = vmatpush1.bf16.msra.mxu0 0
        %466 = vmatprep.mubr.bf16.mxu0 0
        %467 = vmatmul.mubr.bf16.gmra.mrb[0].mxu0 %v432
        %v468 = vpop.f32.mrb[0].mxu0
        %v469 = vadd.f32 0.0, %v468
        %v470 = vpop.f32.mrb[0].mxu0
        %v471 = vpop.f32.mrb[0].mxu0
        %v472 = vpop.f32.mrb[0].mxu0
        %473 = vdwg.mxu0
        %v474 = vpack.c.bf16 %v317, %v317
        %v475 = vld [vmem:[%s5] sm:$0xf]
        %v476 = vld [vmem:[%s5 + $0x4] sm:$0xf]
        %v477 = vld [vmem:[%s5 + $0x8] sm:$0xf]
        %v478 = vld [vmem:[%s5 + $0xc] sm:$0xf]
        %v483 = vunpack.c.l.b16 %v475
        %v484 = vunpack.c.l.b16 %v476
        %v485 = vunpack.c.l.b16 %v477
        %v486 = vunpack.c.l.b16 %v478
        %v487 = vpack.c.b16 %v484, %v483
        %v488 = vpack.c.b16 %v486, %v485
        %v492 = vsel %vm335, %v474, 0
        %494 = vmatprep.subr.bf16.mxu0 0
        %495 = vmatpush1.bf16.msra.mxu0 %v487
        %496 = vmatprep.subr.bf16.mxu0 0
        %497 = vmatpush1.bf16.msra.mxu0 %v488
        %498 = vmatprep.subr.bf16.mxu0 0
        %499 = vmatpush1.bf16.msra.mxu0 0
        %500 = vmatprep.subr.bf16.mxu0 0
        %501 = vmatpush1.bf16.msra.mxu0 0
        %502 = vmatprep.subr.bf16.mxu0 0
        %503 = vmatpush1.bf16.msra.mxu0 0
        %504 = vmatprep.subr.bf16.mxu0 0
        %505 = vmatpush1.bf16.msra.mxu0 0
        %506 = vmatprep.subr.bf16.mxu0 0
        %507 = vmatpush1.bf16.msra.mxu0 0
        %508 = vmatprep.subr.bf16.mxu0 0
        %509 = vmatpush1.bf16.msra.mxu0 0
        %510 = vmatprep.subr.bf16.mxu0 0
        %511 = vmatpush1.bf16.msra.mxu0 0
        %512 = vmatprep.subr.bf16.mxu0 0
        %513 = vmatpush1.bf16.msra.mxu0 0
        %514 = vmatprep.subr.bf16.mxu0 0
        %515 = vmatpush1.bf16.msra.mxu0 0
        %516 = vmatprep.subr.bf16.mxu0 0
        %517 = vmatpush1.bf16.msra.mxu0 0
        %518 = vmatprep.subr.bf16.mxu0 0
        %519 = vmatpush1.bf16.msra.mxu0 0
        %520 = vmatprep.subr.bf16.mxu0 0
        %521 = vmatpush1.bf16.msra.mxu0 0
        %522 = vmatprep.subr.bf16.mxu0 0
        %523 = vmatpush1.bf16.msra.mxu0 0
        %524 = vmatprep.subr.bf16.mxu0 0
        %525 = vmatpush1.bf16.msra.mxu0 0
        %526 = vmatprep.mubr.bf16.mxu0 0
        %527 = vmatmul.mubr.bf16.gmra.mrb[0].mxu0 %v492
        %v528 = vpop.f32.mrb[0].mxu0
        %v529 = vadd.f32 0.0, %v528
        %v530 = vpop.f32.mrb[0].mxu0
        %v531 = vpop.f32.mrb[0].mxu0
        %v532 = vpop.f32.mrb[0].mxu0
        %533 = vdwg.mxu0
        %v534 = vxor.u32 %v529, 2147483648
        %v535 = vmul.f32 %v534, 1.442695
        %v536 = vpow.pop %v535
        %v537 = vadd.f32 %v536, 1.0
        %v538 = vrcp.pop %v537
        %v539 = vmul.f32 1.0, %v538
        %v540 = vmul.f32 %v539, %v469
        %541 = vst.msk [vmem:[%s266] sm:$0xff] %vm335, %v540
        %s542 = sand.u32 %s175, 1
        %s543 = scalar_lea.sflag [#allocation4], %s542
        %s544 = sand.u32 %s175, 1
        %s545 = smul.addr %s544, 8
        %s546 = scalar_lea.vmem [#allocation3], %s545
        // Predicated region
        $region49: #{tpu_custom_call.1} parent=43 // pred_check
          %p547 = pneg %p185
        $region50: #{tpu_custom_call.1} parent=43 // pred_check_branch
          %549 = sbr.rel (%p547) target = $region52
        $region51: #{tpu_custom_call.1} parent=43 // pred_region
          %s551 = ssub.s32 128, 128
          %552 = vsyncadd %s543, %s551
          %s553 = smul.addr %s24, 2
          %s554 = sadd.s32 %s25, %s553
          %s555 = smul.addr %s554, 128
          %s556 = scalar_lea.hbm %s6, %s555
          %s558 = sshll.u32 %s546, 4
          %s559 = int_to_ptr.vmem [resolvable:$true] %s558
          %561 = dma.vmem_to_hbm [thread:$0]  %s559, 128, %s556, %s543
        $region52: #{tpu_custom_call.1} parent=43 // pred_fallthru
          _
      $region44: #{tpu_custom_call.1} parent=5 // pred_fallthru
        _
      %p562 = scmp.le.s32.totalorder 2, %s15
      // Predicated region
      $region53: #{tpu_custom_call.1} parent=5 // pred_check
        %p563 = pneg %p562
      $region54: #{tpu_custom_call.1} parent=5 // pred_check_branch
        %565 = sbr.rel (%p563) target = $region56
      $region55: #{tpu_custom_call.1} parent=5 // pred_region
        %s566 = ssub.s32 %s15, 2
        // Predicated region
        $region57: #{tpu_custom_call.1} parent=55 // pred_check
          %p567 = pneg %p191
        $region58: #{tpu_custom_call.1} parent=55 // pred_check_branch
          %569 = sbr.rel (%p567) target = $region60
        $region59: #{tpu_custom_call.1} parent=55 // pred_region
          %s570 = sand.u32 %s176, 1
          %s571 = scalar_lea.sflag [#allocation4], %s570
          %s572 = sand.u32 %s176, 1
          %s573 = smul.addr %s572, 8
          %s574 = scalar_lea.vmem [#allocation3], %s573
          %575 = dma.done %s571, 128
        $region60: #{tpu_custom_call.1} parent=55 // pred_fallthru
          _
      $region56: #{tpu_custom_call.1} parent=5 // pred_fallthru
        _
    $region6: #{tpu_custom_call.1} parent=1 // loop_footer
      %s19 = sadd.s32 1, %s15
    $region7: #{tpu_custom_call.1} parent=1 // loop_footer_branch
      %14 = sbr.rel target = $region3
    $region8: #{tpu_custom_call.1} parent=1 // loop_exit
      _
    %576 = vsyncpa [#allocation4], 1
    %s577 = scalar_lea.sflag [#allocation4], 1
    %578 = vsyncpa %s577, 1

</llo_original>
